<compile_context>
chip_gen: v5e
topology: v5e:2x2
jax: 0.10.0
libtpu: 0.0.40
codegen_flags: <defaults>
</compile_context>

<pallas_src>
import functools

import jax
import jax.numpy as jnp
from jax.experimental import pallas as pl
from jax.experimental.pallas import tpu as pltpu


def _round_up(n, m):
    return ((n + m - 1) // m) * m


def _vmem_limit_bytes():
    """Per-generation VMEM limit: ~3/4 of physical, capped at 100 MiB."""
    cap = 64 * 1024 * 1024  # conservative fallback (v7x per-TC VMEM)
    try:
        info = pltpu.get_tpu_info()
        cap = int(getattr(info, "vmem_capacity_bytes", cap))
    except Exception:
        pass
    return int(min(cap * 3 // 4, 100 * 1024 * 1024))


def _feedforward_kernel(x_ref, w1_ref, b1_ref, w2_ref, b2_ref,
                        gamma_ref, beta_ref, o_ref, *, eps, rows, needs_mask):
    # Single load of the activation tile (bf16), reused for MXU and residual.
    xv = x_ref[...]                                           # (TM, H) bf16

    if needs_mask:
        # Ragged final block: the rows past `rows` contain undefined VMEM data.
        # Zero them so every intermediate (matmul, LN divide) stays finite.
        # Their output rows are out-of-bounds and discarded on writeback.
        tm = xv.shape[0]
        valid = rows - pl.program_id(0) * tm
        row_ids = jax.lax.broadcasted_iota(jnp.int32, xv.shape, 0)
        xv = jnp.where(row_ids < valid, xv, jnp.zeros_like(xv))

    x_f32 = xv.astype(jnp.float32)                            # residual / LN in f32

    w1 = w1_ref[...]                                          # (H, D) bf16, resident
    w2 = w2_ref[...]                                          # (D, H) bf16, resident
    b1 = b1_ref[...]                                          # (1, D) f32
    b2 = b2_ref[...]                                          # (1, H) f32
    gamma = gamma_ref[...]                                    # (1, H) f32
    beta = beta_ref[...]                                      # (1, H) f32

    # inner_layer (Conv1d(H, D, 1)) + ReLU  -- bf16 MXU, f32 accumulation.
    h = jnp.dot(xv, w1, preferred_element_type=jnp.float32)   # (TM, D)
    h = jnp.maximum(h + b1, 0.0)

    # outer_layer (Conv1d(D, H, 1)) + residual (f32).
    y = jnp.dot(h.astype(jnp.bfloat16), w2,
                preferred_element_type=jnp.float32)           # (TM, H)
    y = y + b2 + x_f32

    # LayerNormalization: torch.std is UNBIASED (divides by H-1) and eps is
    # added to sigma (not the variance), matching the custom PyTorch module.
    hidden = y.shape[-1]
    mu = jnp.mean(y, axis=-1, keepdims=True)
    diff = y - mu
    var = jnp.sum(diff * diff, axis=-1, keepdims=True) * (1.0 / (hidden - 1))
    sigma = jnp.sqrt(var)
    inv = pl.reciprocal(sigma + eps)          # exact; free while HBM-bound
    o_ref[...] = (diff * inv * gamma + beta).astype(o_ref.dtype)


def feedforward_pallas(x, w1, b1, w2, b2, gamma, beta, *,
                       eps=1e-3, tm=512, out_dtype=None):
    """x: (B, L, H). w1: (H, D), w2: (D, H).  Returns (B, L, H)."""
    B, L, H = x.shape
    D = w1.shape[1]
    rows = B * L
    out_dtype = x.dtype if out_dtype is None else out_dtype

    # Stream activations in bf16: the only non-resident per-step HBM traffic.
    x2 = x.reshape(rows, H).astype(jnp.bfloat16)

    # Row tile: large for MXU / DMA efficiency, clamped for tiny inputs, and
    # adjusted so the grid has >= 2 steps when possible (v7x megacore split +
    # pipeline overlap).  No padding: Pallas handles the ragged final block.
    tm = min(tm, _round_up(rows, 8))
    if pl.cdiv(rows, tm) < 2 and rows > 8:
        tm = _round_up(pl.cdiv(rows, 2), 8)
    num_steps = pl.cdiv(rows, tm)
    needs_mask = (rows % tm) != 0

    # bf16 weights: native MXU rate, half the weight VMEM footprint.
    w1_bf = w1.astype(jnp.bfloat16)
    w2_bf = w2.astype(jnp.bfloat16)
    b1_2 = b1.reshape(1, D).astype(jnp.float32)
    b2_2 = b2.reshape(1, H).astype(jnp.float32)
    g_2 = gamma.reshape(1, H).astype(jnp.float32)
    be_2 = beta.reshape(1, H).astype(jnp.float32)

    kernel = functools.partial(_feedforward_kernel, eps=eps, rows=rows,
                               needs_mask=needs_mask)

    out_bytes = jnp.dtype(out_dtype).itemsize
    cost = pl.CostEstimate(
        flops=2 * rows * H * D * 2 + 12 * rows * H,
        transcendentals=2 * rows,
        bytes_accessed=(rows * H * 2                 # x in (bf16)
                        + rows * H * out_bytes       # out
                        + 2 * H * D * 2              # bf16 weights
                        + (2 * D + 6 * H) * 4))      # biases / gamma / beta

    out = pl.pallas_call(
        kernel,
        out_shape=jax.ShapeDtypeStruct((rows, H), out_dtype),
        grid_spec=pltpu.PrefetchScalarGridSpec(
            num_scalar_prefetch=0,
            grid=(num_steps,),
            in_specs=[
                pl.BlockSpec((tm, H), lambda i: (i, 0)),   # x rows (streamed, bf16)
                pl.BlockSpec((H, D), lambda i: (0, 0)),    # W1 (bf16, resident)
                pl.BlockSpec((1, D), lambda i: (0, 0)),    # b1
                pl.BlockSpec((D, H), lambda i: (0, 0)),    # W2 (bf16, resident)
                pl.BlockSpec((1, H), lambda i: (0, 0)),    # b2
                pl.BlockSpec((1, H), lambda i: (0, 0)),    # gamma (a_2)
                pl.BlockSpec((1, H), lambda i: (0, 0)),    # beta  (b_2)
            ],
            out_specs=pl.BlockSpec((tm, H), lambda i: (i, 0)),
        ),
        compiler_params=pltpu.CompilerParams(
            dimension_semantics=("parallel",),             # megacore on v7x
            vmem_limit_bytes=_vmem_limit_bytes()),
        cost_estimate=cost,
    )(x2, w1_bf, b1_2, w2_bf, b2_2, g_2, be_2)

    return out.reshape(B, L, H)


def feedforward_ref(x, w1, b1, w2, b2, gamma, beta, eps=1e-3):
    """Pure-JAX f32 reference mirroring the PyTorch forward exactly."""
    h = jnp.maximum(jnp.einsum("blh,hd->bld", x, w1) + b1, 0.0)
    y = jnp.einsum("bld,dh->blh", h, w2) + b2 + x
    mu = jnp.mean(y, axis=-1, keepdims=True)
    var = jnp.sum((y - mu) ** 2, axis=-1, keepdims=True) / (y.shape[-1] - 1)
    sigma = jnp.sqrt(var)
    return (y - mu) / (sigma + eps) * gamma + beta


def _run_case(B, L, H, D, key):
    kx, k1, k2, k3, k4 = jax.random.split(key, 5)
    x = jax.random.normal(kx, (B, L, H), dtype=jnp.float32)
    w1 = jax.random.normal(k1, (H, D), dtype=jnp.float32) * (1.0 / jnp.sqrt(H))
    b1 = jax.random.normal(k2, (D,), dtype=jnp.float32) * 0.1
    w2 = jax.random.normal(k3, (D, H), dtype=jnp.float32) * (1.0 / jnp.sqrt(D))
    b2 = jax.random.normal(k4, (H,), dtype=jnp.float32) * 0.1
    gamma = jnp.ones((H,), dtype=jnp.float32)   # a_2
    beta = jnp.zeros((H,), dtype=jnp.float32)   # b_2

    out = feedforward_pallas(x, w1, b1, w2, b2, gamma, beta)
    out = jax.block_until_ready(out)
    ref = feedforward_ref(x, w1, b1, w2, b2, gamma, beta)

    assert out.shape == (B, L, H)
    # Tolerance reflects bf16 activation/weight streaming (f32 accumulation).
    assert jnp.allclose(out, ref, atol=5e-2, rtol=5e-2), \
        f"mismatch vs reference for shape {(B, L, H, D)}"


if __name__ == "__main__":
    key = jax.random.PRNGKey(0)
    k_a, k_b = jax.random.split(key)

    # Lane-dense hidden dim (H multiple of 128) so output stores are unmasked.
    # Case A: rows divide the tile evenly (no tail mask, 2-step grid).
    _run_case(B=2, L=8, H=128, D=256, key=k_a)
    # Case B: ragged row count exercising the in-kernel tail mask / ragged block.
    _run_case(B=3, L=5, H=128, D=256, key=k_b)

    print("KERNEL_OK")
</pallas_src>

<mosaic_0001>
module attributes {stable_mosaic.version = 11 : i64} {
  func.func @_feedforward_kernel(%arg0: i32, %arg1: memref<8x128xbf16, #tpu.memory_space<vmem>>, %arg2: memref<128x256xbf16, #tpu.memory_space<vmem>>, %arg3: memref<1x256xf32, #tpu.memory_space<vmem>>, %arg4: memref<256x128xbf16, #tpu.memory_space<vmem>>, %arg5: memref<1x128xf32, #tpu.memory_space<vmem>>, %arg6: memref<1x128xf32, #tpu.memory_space<vmem>>, %arg7: memref<1x128xf32, #tpu.memory_space<vmem>>, %arg8: memref<8x128xf32, #tpu.memory_space<vmem>>) attributes {dimension_semantics = [#tpu.dimension_semantics<parallel>], iteration_bounds = array<i64: 2>, scalar_prefetch = 0 : i64, scratch_operands = 0 : i64, tpu.core_type = #tpu.core_type<tc>, window_params = [{transform_indices = @transform_0, window_bounds = array<i64: 8, 128>}, {pipeline_mode = #tpu.pipeline_mode<synchronous>, transform_indices = @transform_1, window_bounds = array<i64: 128, 256>}, {pipeline_mode = #tpu.pipeline_mode<synchronous>, transform_indices = @transform_2, window_bounds = array<i64: 1, 256>}, {pipeline_mode = #tpu.pipeline_mode<synchronous>, transform_indices = @transform_3, window_bounds = array<i64: 256, 128>}, {pipeline_mode = #tpu.pipeline_mode<synchronous>, transform_indices = @transform_4, window_bounds = array<i64: 1, 128>}, {pipeline_mode = #tpu.pipeline_mode<synchronous>, transform_indices = @transform_5, window_bounds = array<i64: 1, 128>}, {pipeline_mode = #tpu.pipeline_mode<synchronous>, transform_indices = @transform_6, window_bounds = array<i64: 1, 128>}, {transform_indices = @transform_7, window_bounds = array<i64: 8, 128>}]} {
    %c0 = arith.constant 0 : index
    %c0_0 = arith.constant 0 : index
    %0 = vector.load %arg1[%c0, %c0_0] : memref<8x128xbf16, #tpu.memory_space<vmem>>, vector<8x128xbf16>
    %1 = arith.extf %0 : vector<8x128xbf16> to vector<8x128xf32>
    %c0_1 = arith.constant 0 : index
    %c0_2 = arith.constant 0 : index
    %2 = vector.load %arg2[%c0_1, %c0_2] : memref<128x256xbf16, #tpu.memory_space<vmem>>, vector<128x256xbf16>
    %c0_3 = arith.constant 0 : index
    %c0_4 = arith.constant 0 : index
    %3 = vector.load %arg4[%c0_3, %c0_4] : memref<256x128xbf16, #tpu.memory_space<vmem>>, vector<256x128xbf16>
    %c0_5 = arith.constant 0 : index
    %c0_6 = arith.constant 0 : index
    %4 = vector.load %arg3[%c0_5, %c0_6] : memref<1x256xf32, #tpu.memory_space<vmem>>, vector<1x256xf32>
    %c0_7 = arith.constant 0 : index
    %c0_8 = arith.constant 0 : index
    %5 = vector.load %arg5[%c0_7, %c0_8] : memref<1x128xf32, #tpu.memory_space<vmem>>, vector<1x128xf32>
    %c0_9 = arith.constant 0 : index
    %c0_10 = arith.constant 0 : index
    %6 = vector.load %arg6[%c0_9, %c0_10] : memref<1x128xf32, #tpu.memory_space<vmem>>, vector<1x128xf32>
    %c0_11 = arith.constant 0 : index
    %c0_12 = arith.constant 0 : index
    %7 = vector.load %arg7[%c0_11, %c0_12] : memref<1x128xf32, #tpu.memory_space<vmem>>, vector<1x128xf32>
    %cst = arith.constant dense<0.000000e+00> : vector<8x256xf32>
    %8 = tpu.matmul %0, %2, %cst {dimension_numbers = #tpu.dot_dimension_numbers<[1], [0], [0], [1], [0, 0, 1, 1], [], []>} : vector<8x128xbf16>, vector<128x256xbf16>, vector<8x256xf32> -> vector<8x256xf32>
    %9 = vector.broadcast %4 : vector<1x256xf32> to vector<8x256xf32>
    %10 = arith.addf %8, %9 : vector<8x256xf32>
    %cst_13 = arith.constant 0.000000e+00 : f32
    %11 = vector.broadcast %cst_13 : f32 to vector<8x256xf32>
    %12 = arith.maximumf %10, %11 : vector<8x256xf32>
    %13 = arith.truncf %12 : vector<8x256xf32> to vector<8x256xbf16>
    %cst_14 = arith.constant dense<0.000000e+00> : vector<8x128xf32>
    %14 = tpu.matmul %13, %3, %cst_14 {dimension_numbers = #tpu.dot_dimension_numbers<[1], [0], [0], [1], [0, 0, 1, 1], [], []>} : vector<8x256xbf16>, vector<256x128xbf16>, vector<8x128xf32> -> vector<8x128xf32>
    %15 = vector.broadcast %5 : vector<1x128xf32> to vector<8x128xf32>
    %16 = arith.addf %14, %15 : vector<8x128xf32>
    %17 = arith.addf %16, %1 : vector<8x128xf32>
    %cst_15 = arith.constant dense<0.000000e+00> : vector<8xf32>
    %18 = vector.multi_reduction <add>, %17, %cst_15 [1] : vector<8x128xf32> to vector<8xf32>
    %19 = vector.shape_cast %18 : vector<8xf32> to vector<8x1xf32>
    %cst_16 = arith.constant 1.280000e+02 : f32
    %20 = vector.broadcast %cst_16 : f32 to vector<8x1xf32>
    %21 = arith.divf %19, %20 : vector<8x1xf32>
    %22 = vector.broadcast %21 : vector<8x1xf32> to vector<8x128xf32>
    %23 = arith.subf %17, %22 : vector<8x128xf32>
    %24 = arith.mulf %23, %23 : vector<8x128xf32>
    %cst_17 = arith.constant dense<0.000000e+00> : vector<8xf32>
    %25 = vector.multi_reduction <add>, %24, %cst_17 [1] : vector<8x128xf32> to vector<8xf32>
    %26 = vector.shape_cast %25 : vector<8xf32> to vector<8x1xf32>
    %cst_18 = arith.constant 0.00787401571 : f32
    %27 = vector.broadcast %cst_18 : f32 to vector<8x1xf32>
    %28 = arith.mulf %26, %27 : vector<8x1xf32>
    %29 = math.sqrt %28 : vector<8x1xf32>
    %cst_19 = arith.constant 1.000000e-03 : f32
    %30 = vector.broadcast %cst_19 : f32 to vector<8x1xf32>
    %31 = arith.addf %29, %30 : vector<8x1xf32>
    %32 = tpu.reciprocal %31 : vector<8x1xf32> -> vector<8x1xf32>
    %33 = vector.broadcast %32 : vector<8x1xf32> to vector<8x128xf32>
    %34 = arith.mulf %23, %33 : vector<8x128xf32>
    %35 = vector.broadcast %6 : vector<1x128xf32> to vector<8x128xf32>
    %36 = arith.mulf %34, %35 : vector<8x128xf32>
    %37 = vector.broadcast %7 : vector<1x128xf32> to vector<8x128xf32>
    %38 = arith.addf %36, %37 : vector<8x128xf32>
    %c0_20 = arith.constant 0 : index
    %c0_21 = arith.constant 0 : index
    %39 = vector.load %arg8[%c0_20, %c0_21] : memref<8x128xf32, #tpu.memory_space<vmem>>, vector<8x128xf32>
    tpu.vector_store %arg8[%c0_20, %c0_21], %38 {strides = array<i32>} : memref<8x128xf32, #tpu.memory_space<vmem>>, vector<8x128xf32>,
    return
  }
  func.func @transform_0(%arg0: i32) -> (i32, i32) {
    %c0_i32 = arith.constant 0 : i32
    %c0_i32_0 = arith.constant 0 : i32
    return %arg0, %c0_i32 : i32, i32
  }
  func.func @transform_1(%arg0: i32) -> (i32, i32) {
    %c0_i32 = arith.constant 0 : i32
    %c0_i32_0 = arith.constant 0 : i32
    %c0_i32_1 = arith.constant 0 : i32
    return %c0_i32, %c0_i32_0 : i32, i32
  }
  func.func @transform_2(%arg0: i32) -> (i32, i32) {
    %c0_i32 = arith.constant 0 : i32
    %c0_i32_0 = arith.constant 0 : i32
    %c0_i32_1 = arith.constant 0 : i32
    return %c0_i32, %c0_i32_0 : i32, i32
  }
  func.func @transform_3(%arg0: i32) -> (i32, i32) {
    %c0_i32 = arith.constant 0 : i32
    %c0_i32_0 = arith.constant 0 : i32
    %c0_i32_1 = arith.constant 0 : i32
    return %c0_i32, %c0_i32_0 : i32, i32
  }
  func.func @transform_4(%arg0: i32) -> (i32, i32) {
    %c0_i32 = arith.constant 0 : i32
    %c0_i32_0 = arith.constant 0 : i32
    %c0_i32_1 = arith.constant 0 : i32
    return %c0_i32, %c0_i32_0 : i32, i32
  }
  func.func @transform_5(%arg0: i32) -> (i32, i32) {
    %c0_i32 = arith.constant 0 : i32
    %c0_i32_0 = arith.constant 0 : i32
    %c0_i32_1 = arith.constant 0 : i32
    return %c0_i32, %c0_i32_0 : i32, i32
  }
  func.func @transform_6(%arg0: i32) -> (i32, i32) {
    %c0_i32 = arith.constant 0 : i32
    %c0_i32_0 = arith.constant 0 : i32
    %c0_i32_1 = arith.constant 0 : i32
    return %c0_i32, %c0_i32_0 : i32, i32
  }
  func.func @transform_7(%arg0: i32) -> (i32, i32) {
    %c0_i32 = arith.constant 0 : i32
    %c0_i32_0 = arith.constant 0 : i32
    return %arg0, %c0_i32 : i32, i32
  }
}

</mosaic_0001>

<llo_original>
// kernel: tpu_custom_call.1
$region0: #{tpu_custom_call.1}
  #allocation0 [shape = 'u32[]', space=smem, size = 0x4, offset = 0x4, fixed_abs, tag = 'smem constant byte address 0x4 - core index']
  #allocation1 [shape = 'u32[72,128]{1,0:T(1,128)}', space=vmem, size = 0x9000, scoped, tag = 'internal scratch']
  %s0 = inlined_call_operand.hbm [shape: bf16[16,128], index: 0, kind: input, shape index: {}]
  %s1 = inlined_call_operand.hbm [shape: bf16[128,256], index: 1, kind: input, shape index: {}]
  %s2 = inlined_call_operand.hbm [shape: f32[1,256], index: 2, kind: input, shape index: {}]
  %s3 = inlined_call_operand.hbm [shape: bf16[256,128], index: 3, kind: input, shape index: {}]
  %s4 = inlined_call_operand.vmem [shape: f32[1,128], index: 4, kind: input, shape index: {}]
  %s5 = inlined_call_operand.vmem [shape: f32[1,128], index: 5, kind: input, shape index: {}]
  %s6 = inlined_call_operand.vmem [shape: f32[1,128], index: 6, kind: input, shape index: {}]
  %s7 = inlined_call_operand.hbm [shape: f32[16,128], index: 7, kind: output, shape index: {}]
  %s8 = sld [smem:[#allocation0]]
  $region77: #{tpu_custom_call.1} parent=0
    _
  %s10 = ssub.s32 1, %s8
  %s11 = scalar_select 0, %s10, %s8
  $region1: #{tpu_custom_call.1} parent=0
    #allocation2 [shape = 'u8[4096]{0}', space=vmem, size = 0x1000, scoped, tag = 'input window, operand 0']
    #allocation3 [shape = 's32[2]{0}', space=sflag, size = 0x8, scoped, tag = 'scoped memory for tpu_custom_call.1']
    #allocation4 [shape = 's32[2]{0}', space=sflag, size = 0x8, scoped, tag = 'scoped memory for tpu_custom_call.1']
    #allocation5 [shape = 'u8[65536]{0}', space=vmem, size = 0x10000, scoped, tag = 'input window, operand 1, single buffered']
    #allocation6 [shape = 's32[1]{0}', space=sflag, size = 0x4, scoped, tag = 'scoped memory for tpu_custom_call.1']
    #allocation7 [shape = 'u8[1024]{0}', space=vmem, size = 0x400, scoped, tag = 'input window, operand 2, single buffered']
    #allocation8 [shape = 'u8[65536]{0}', space=vmem, size = 0x10000, scoped, tag = 'input window, operand 3, single buffered']
    #allocation9 [shape = 's32[1]{0}', space=sflag, size = 0x4, scoped, tag = 'scoped memory for tpu_custom_call.1']
    #allocation10 [shape = 'u8[8192]{0}', space=vmem, size = 0x2000, scoped, tag = 'output window, operand 0']
    %12 = vsyncpa [#allocation3], 0
    %s13 = scalar_lea.sflag [#allocation3], 1
    %14 = vsyncpa %s13, 0
    %15 = vsyncpa [#allocation6], 0
    %16 = vsyncpa [#allocation9], 0
    %17 = vsyncpa [#allocation4], 0
    %s18 = scalar_lea.sflag [#allocation4], 1
    %19 = vsyncpa %s18, 0
    loop: start=0, step=1, limit=4
    $region2: #{tpu_custom_call.1} parent=1 // loop_pre_header
      _
    $region3: #{tpu_custom_call.1} parent=1 // loop_header
      %s21 = sphi 0, %s25
      %p22 = scmp.ge.s32.totalorder %s21, 4
      %s31 = sphi 0, %s33
      %s34 = sphi 0, %s31
      %s35 = sphi 0, %s34
      %s51 = sphi 0, %s35
      %s55 = sphi 0, %s55
      %s57 = sphi 0, %s55
      %s58 = sphi 0, %s57
      %s72 = sphi 0, %s58
      %s76 = sphi 0, %s76
      %s78 = sphi 0, %s76
      %s79 = sphi 0, %s78
      %s93 = sphi 0, %s79
      %s97 = sphi 0, %s97
      %s99 = sphi 0, %s97
      %s100 = sphi 0, %s99
      %s114 = sphi 0, %s100
      %s118 = sphi 0, %s118
      %s120 = sphi 0, %s118
      %s121 = sphi 0, %s120
      %s135 = sphi 0, %s121
      %s139 = sphi 0, %s139
      %s141 = sphi 0, %s139
      %s142 = sphi 0, %s141
      %s156 = sphi 0, %s142
      %s160 = sphi 0, %s160
      %s162 = sphi 0, %s160
      %s163 = sphi 0, %s162
      %s177 = sphi 0, %s163
      %s183 = sphi 0, %s185
      %s186 = sphi 0, %s183
      %s187 = sphi 0, %s186
      %s203 = sphi 0, %s187
    $region4: #{tpu_custom_call.1} parent=1 // loop_header_branch
      %24 = sbr.rel (%p22) target = $region8
    $region5: #{tpu_custom_call.1} parent=1 // loop_body
      %s26 = ssub.s32 %s21, 1
      %s27 = ssub.s32 %s21, 2
      %s28 = sadd.s32 %s21, 1
      %s29 = ssub.s32 %s21, %s28
      %p30 = scmp.eq.s32.totalorder %s29, 0
      %s32 = sadd.s32 %s31, 1
      %s33 = scalar_select %p30, %s31, %s32
      %p36 = pneg %p30
      %p37 = scmp.eq.s32.totalorder %s21, 1
      %p38 = por %p36, %p37
      %p39 = scmp.ne.s32.totalorder %s31, %s34
      %p40 = scmp.eq.s32.totalorder %s21, 0
      %p41 = por %p39, %p40
      %p42 = scmp.ne.s32.totalorder %s31, %s34
      %p43 = scmp.eq.s32.totalorder %s26, 1
      %p44 = por %p42, %p43
      %p45 = scmp.ne.s32.totalorder %s34, %s35
      %p46 = scmp.eq.s32.totalorder %s26, 0
      %p47 = por %p45, %p46
      %p48 = scmp.ne.s32.totalorder %s34, %s35
      %p49 = scmp.eq.s32.totalorder %s27, 1
      %p50 = por %p48, %p49
      %p52 = scmp.ne.s32.totalorder %s35, %s51
      %p53 = scmp.eq.s32.totalorder %s27, 0
      %p54 = por %p52, %p53
      %s56 = sadd.s32 %s55, 1
      %p59 = scmp.eq.s32.totalorder %s21, 1
      %p60 = scmp.ne.s32.totalorder %s55, %s57
      %p61 = scmp.eq.s32.totalorder %s21, 0
      %p62 = por %p60, %p61
      %p63 = scmp.ne.s32.totalorder %s55, %s57
      %p64 = scmp.eq.s32.totalorder %s26, 1
      %p65 = por %p63, %p64
      %p66 = scmp.ne.s32.totalorder %s57, %s58
      %p67 = scmp.eq.s32.totalorder %s26, 0
      %p68 = por %p66, %p67
      %p69 = scmp.ne.s32.totalorder %s57, %s58
      %p70 = scmp.eq.s32.totalorder %s27, 1
      %p71 = por %p69, %p70
      %p73 = scmp.ne.s32.totalorder %s58, %s72
      %p74 = scmp.eq.s32.totalorder %s27, 0
      %p75 = por %p73, %p74
      %s77 = sadd.s32 %s76, 1
      %p80 = scmp.eq.s32.totalorder %s21, 1
      %p81 = scmp.ne.s32.totalorder %s76, %s78
      %p82 = scmp.eq.s32.totalorder %s21, 0
      %p83 = por %p81, %p82
      %p84 = scmp.ne.s32.totalorder %s76, %s78
      %p85 = scmp.eq.s32.totalorder %s26, 1
      %p86 = por %p84, %p85
      %p87 = scmp.ne.s32.totalorder %s78, %s79
      %p88 = scmp.eq.s32.totalorder %s26, 0
      %p89 = por %p87, %p88
      %p90 = scmp.ne.s32.totalorder %s78, %s79
      %p91 = scmp.eq.s32.totalorder %s27, 1
      %p92 = por %p90, %p91
      %p94 = scmp.ne.s32.totalorder %s79, %s93
      %p95 = scmp.eq.s32.totalorder %s27, 0
      %p96 = por %p94, %p95
      %s98 = sadd.s32 %s97, 1
      %p101 = scmp.eq.s32.totalorder %s21, 1
      %p102 = scmp.ne.s32.totalorder %s97, %s99
      %p103 = scmp.eq.s32.totalorder %s21, 0
      %p104 = por %p102, %p103
      %p105 = scmp.ne.s32.totalorder %s97, %s99
      %p106 = scmp.eq.s32.totalorder %s26, 1
      %p107 = por %p105, %p106
      %p108 = scmp.ne.s32.totalorder %s99, %s100
      %p109 = scmp.eq.s32.totalorder %s26, 0
      %p110 = por %p108, %p109
      %p111 = scmp.ne.s32.totalorder %s99, %s100
      %p112 = scmp.eq.s32.totalorder %s27, 1
      %p113 = por %p111, %p112
      %p115 = scmp.ne.s32.totalorder %s100, %s114
      %p116 = scmp.eq.s32.totalorder %s27, 0
      %p117 = por %p115, %p116
      %s119 = sadd.s32 %s118, 1
      %p122 = scmp.eq.s32.totalorder %s21, 1
      %p123 = scmp.ne.s32.totalorder %s118, %s120
      %p124 = scmp.eq.s32.totalorder %s21, 0
      %p125 = por %p123, %p124
      %p126 = scmp.ne.s32.totalorder %s118, %s120
      %p127 = scmp.eq.s32.totalorder %s26, 1
      %p128 = por %p126, %p127
      %p129 = scmp.ne.s32.totalorder %s120, %s121
      %p130 = scmp.eq.s32.totalorder %s26, 0
      %p131 = por %p129, %p130
      %p132 = scmp.ne.s32.totalorder %s120, %s121
      %p133 = scmp.eq.s32.totalorder %s27, 1
      %p134 = por %p132, %p133
      %p136 = scmp.ne.s32.totalorder %s121, %s135
      %p137 = scmp.eq.s32.totalorder %s27, 0
      %p138 = por %p136, %p137
      %s140 = sadd.s32 %s139, 1
      %p143 = scmp.eq.s32.totalorder %s21, 1
      %p144 = scmp.ne.s32.totalorder %s139, %s141
      %p145 = scmp.eq.s32.totalorder %s21, 0
      %p146 = por %p144, %p145
      %p147 = scmp.ne.s32.totalorder %s139, %s141
      %p148 = scmp.eq.s32.totalorder %s26, 1
      %p149 = por %p147, %p148
      %p150 = scmp.ne.s32.totalorder %s141, %s142
      %p151 = scmp.eq.s32.totalorder %s26, 0
      %p152 = por %p150, %p151
      %p153 = scmp.ne.s32.totalorder %s141, %s142
      %p154 = scmp.eq.s32.totalorder %s27, 1
      %p155 = por %p153, %p154
      %p157 = scmp.ne.s32.totalorder %s142, %s156
      %p158 = scmp.eq.s32.totalorder %s27, 0
      %p159 = por %p157, %p158
      %s161 = sadd.s32 %s160, 1
      %p164 = scmp.eq.s32.totalorder %s21, 1
      %p165 = scmp.ne.s32.totalorder %s160, %s162
      %p166 = scmp.eq.s32.totalorder %s21, 0
      %p167 = por %p165, %p166
      %p168 = scmp.ne.s32.totalorder %s160, %s162
      %p169 = scmp.eq.s32.totalorder %s26, 1
      %p170 = por %p168, %p169
      %p171 = scmp.ne.s32.totalorder %s162, %s163
      %p172 = scmp.eq.s32.totalorder %s26, 0
      %p173 = por %p171, %p172
      %p174 = scmp.ne.s32.totalorder %s162, %s163
      %p175 = scmp.eq.s32.totalorder %s27, 1
      %p176 = por %p174, %p175
      %p178 = scmp.ne.s32.totalorder %s163, %s177
      %p179 = scmp.eq.s32.totalorder %s27, 0
      %p180 = por %p178, %p179
      %s181 = ssub.s32 %s21, %s28
      %p182 = scmp.eq.s32.totalorder %s181, 0
      %s184 = sadd.s32 %s183, 1
      %s185 = scalar_select %p182, %s183, %s184
      %p188 = pneg %p182
      %p189 = scmp.eq.s32.totalorder %s21, 1
      %p190 = por %p188, %p189
      %p191 = scmp.ne.s32.totalorder %s183, %s186
      %p192 = scmp.eq.s32.totalorder %s21, 0
      %p193 = por %p191, %p192
      %p194 = scmp.ne.s32.totalorder %s183, %s186
      %p195 = scmp.eq.s32.totalorder %s26, 1
      %p196 = por %p194, %p195
      %p197 = scmp.ne.s32.totalorder %s186, %s187
      %p198 = scmp.eq.s32.totalorder %s26, 0
      %p199 = por %p197, %p198
      %p200 = scmp.ne.s32.totalorder %s186, %s187
      %p201 = scmp.eq.s32.totalorder %s27, 1
      %p202 = por %p200, %p201
      %p204 = scmp.ne.s32.totalorder %s187, %s203
      %p205 = scmp.eq.s32.totalorder %s27, 0
      %p206 = por %p204, %p205
      %p207 = scmp.le.s32.totalorder 1, %s21
      %p208 = scmp.lt.s32.totalorder %s21, 3
      %p209 = pnand %p207, %p208
      %p210 = pneg %p209
      // Predicated region
      $region9: #{tpu_custom_call.1} parent=5 // pred_check
        _
      $region10: #{tpu_custom_call.1} parent=5 // pred_check_branch
        %212 = sbr.rel (%p209) target = $region12
      $region11: #{tpu_custom_call.1} parent=5 // pred_region
        %s213 = ssub.s32 %s21, 1
        // Predicated region
        $region13: #{tpu_custom_call.1} parent=11 // pred_check
          %p214 = pneg %p68
        $region14: #{tpu_custom_call.1} parent=11 // pred_check_branch
          %216 = sbr.rel (%p214) target = $region16
        $region15: #{tpu_custom_call.1} parent=11 // pred_region
          %218 = vsyncadd [#allocation6], 0
          %s219 = sshll.u32 %s1, 4
          %s220 = int_to_ptr.hbm [resolvable:$true] %s219
          %s221 = sshll.u32 [#allocation5], 4
          %s222 = int_to_ptr.vmem [resolvable:$true] %s221
          %227 = dma.hbm_to_vmem [thread:$0]  %s220, 2048, %s222, [#allocation6], 128, 128, 8
        $region16: #{tpu_custom_call.1} parent=11 // pred_fallthru
          _
        // Predicated region
        $region17: #{tpu_custom_call.1} parent=11 // pred_check
          %p228 = pneg %p89
        $region18: #{tpu_custom_call.1} parent=11 // pred_check_branch
          %230 = sbr.rel (%p228) target = $region20
        $region19: #{tpu_custom_call.1} parent=11 // pred_region
          %232 = vsyncadd [#allocation6], 0
          %s234 = sshll.u32 %s2, 4
          %s235 = int_to_ptr.hbm [resolvable:$true] %s234
          %s236 = sshll.u32 [#allocation7], 4
          %s237 = int_to_ptr.vmem [resolvable:$true] %s236
          %239 = dma.hbm_to_vmem [thread:$0]  %s235, 32, %s237, [#allocation6]
        $region20: #{tpu_custom_call.1} parent=11 // pred_fallthru
          _
        // Predicated region
        $region21: #{tpu_custom_call.1} parent=11 // pred_check
          %p240 = pneg %p110
        $region22: #{tpu_custom_call.1} parent=11 // pred_check_branch
          %242 = sbr.rel (%p240) target = $region24
        $region23: #{tpu_custom_call.1} parent=11 // pred_region
          %244 = vsyncadd [#allocation9], 0
          %s245 = sshll.u32 %s3, 4
          %s246 = int_to_ptr.hbm [resolvable:$true] %s245
          %s247 = sshll.u32 [#allocation8], 4
          %s248 = int_to_ptr.vmem [resolvable:$true] %s247
          %253 = dma.hbm_to_vmem [thread:$0]  %s246, 2048, %s248, [#allocation9], 64, 64, 4
        $region24: #{tpu_custom_call.1} parent=11 // pred_fallthru
          _
        // Predicated region
        $region25: #{tpu_custom_call.1} parent=11 // pred_check
          %p254 = pneg %p131
        $region26: #{tpu_custom_call.1} parent=11 // pred_check_branch
          %256 = sbr.rel (%p254) target = $region28
        $region27: #{tpu_custom_call.1} parent=11 // pred_region
          _
        $region28: #{tpu_custom_call.1} parent=11 // pred_fallthru
          _
        // Predicated region
        $region29: #{tpu_custom_call.1} parent=11 // pred_check
          %p257 = pneg %p152
        $region30: #{tpu_custom_call.1} parent=11 // pred_check_branch
          %259 = sbr.rel (%p257) target = $region32
        $region31: #{tpu_custom_call.1} parent=11 // pred_region
          _
        $region32: #{tpu_custom_call.1} parent=11 // pred_fallthru
          _
        // Predicated region
        $region33: #{tpu_custom_call.1} parent=11 // pred_check
          %p260 = pneg %p173
        $region34: #{tpu_custom_call.1} parent=11 // pred_check_branch
          %262 = sbr.rel (%p260) target = $region36
        $region35: #{tpu_custom_call.1} parent=11 // pred_region
          _
        $region36: #{tpu_custom_call.1} parent=11 // pred_fallthru
          _
      $region12: #{tpu_custom_call.1} parent=5 // pred_fallthru
        _
      %p263 = scmp.lt.s32.totalorder %s21, 2
      // Predicated region
      $region37: #{tpu_custom_call.1} parent=5 // pred_check
        %p264 = pneg %p263
      $region38: #{tpu_custom_call.1} parent=5 // pred_check_branch
        %266 = sbr.rel (%p264) target = $region40
      $region39: #{tpu_custom_call.1} parent=5 // pred_region
        // Predicated region
        $region41: #{tpu_custom_call.1} parent=39 // pred_check
          %p267 = pneg %p41
        $region42: #{tpu_custom_call.1} parent=39 // pred_check_branch
          %269 = sbr.rel (%p267) target = $region44
        $region43: #{tpu_custom_call.1} parent=39 // pred_region
          %s270 = sand.u32 %s31, 1
          %s271 = scalar_lea.sflag [#allocation3], %s270
          %s272 = sand.u32 %s31, 1
          %s273 = smul.addr %s272, 4
          %s274 = scalar_lea.vmem [#allocation2], %s273
          %276 = vsyncadd %s271, 0
          %s277 = smul.addr %s21, 4
          %s278 = scalar_lea.hbm %s0, %s277
          %s280 = sshll.u32 %s278, 4
          %s281 = int_to_ptr.hbm [resolvable:$true] %s280
          %s282 = sshll.u32 %s274, 4
          %s283 = int_to_ptr.vmem [resolvable:$true] %s282
          %285 = dma.hbm_to_vmem [thread:$0]  %s281, 64, %s283, %s271
        $region44: #{tpu_custom_call.1} parent=39 // pred_fallthru
          _
      $region40: #{tpu_custom_call.1} parent=5 // pred_fallthru
        _
      %p286 = scmp.le.s32.totalorder 1, %s21
      %p287 = scmp.lt.s32.totalorder %s21, 3
      %p288 = pnand %p286, %p287
      %p289 = pneg %p288
      // Predicated region
      $region45: #{tpu_custom_call.1} parent=5 // pred_check
        _
      $region46: #{tpu_custom_call.1} parent=5 // pred_check_branch
        %291 = sbr.rel (%p288) target = $region48
      $region47: #{tpu_custom_call.1} parent=5 // pred_region
        %s292 = ssub.s32 %s21, 1
        %s293 = sand.u32 %s34, 1
        %s294 = scalar_lea.sflag [#allocation3], %s293
        %s295 = sand.u32 %s34, 1
        %s296 = smul.addr %s295, 4
        %s297 = scalar_lea.vmem [#allocation2], %s296
        // Predicated region
        $region49: #{tpu_custom_call.1} parent=47 // pred_check
          %p298 = pneg %p47
        $region50: #{tpu_custom_call.1} parent=47 // pred_check_branch
          %300 = sbr.rel (%p298) target = $region52
        $region51: #{tpu_custom_call.1} parent=47 // pred_region
          %302 = dma.done %s294, 64
        $region52: #{tpu_custom_call.1} parent=47 // pred_fallthru
          _
        // Predicated region
        $region53: #{tpu_custom_call.1} parent=47 // pred_check
          %p303 = pneg %p68
        $region54: #{tpu_custom_call.1} parent=47 // pred_check_branch
          %305 = sbr.rel (%p303) target = $region56
        $region55: #{tpu_custom_call.1} parent=47 // pred_region
          %307 = dma.done [#allocation6], 2048
        $region56: #{tpu_custom_call.1} parent=47 // pred_fallthru
          _
        // Predicated region
        $region57: #{tpu_custom_call.1} parent=47 // pred_check
          %p308 = pneg %p89
        $region58: #{tpu_custom_call.1} parent=47 // pred_check_branch
          %310 = sbr.rel (%p308) target = $region60
        $region59: #{tpu_custom_call.1} parent=47 // pred_region
          %312 = dma.done [#allocation6], 32
        $region60: #{tpu_custom_call.1} parent=47 // pred_fallthru
          _
        // Predicated region
        $region61: #{tpu_custom_call.1} parent=47 // pred_check
          %p313 = pneg %p110
        $region62: #{tpu_custom_call.1} parent=47 // pred_check_branch
          %315 = sbr.rel (%p313) target = $region64
        $region63: #{tpu_custom_call.1} parent=47 // pred_region
          %317 = dma.done [#allocation9], 2048
        $region64: #{tpu_custom_call.1} parent=47 // pred_fallthru
          _
        %s318 = sand.u32 %s34, 1
        %s319 = scalar_lea.sflag [#allocation3], %s318
        %s320 = sand.u32 %s34, 1
        %s321 = smul.addr %s320, 4
        %s322 = scalar_lea.vmem [#allocation2], %s321
        %p323 = pneg %p47
        %p324 = pneg %p44
        %p325 = pneg %p68
        %p326 = pneg %p65
        %p327 = pneg %p89
        %p328 = pneg %p86
        %p329 = pneg %p110
        %p330 = pneg %p107
        %p331 = pneg %p131
        %p332 = pneg %p128
        %p333 = pneg %p152
        %p334 = pneg %p149
        %p335 = pneg %p173
        %p336 = pneg %p170
        %p337 = pneg %p199
        %p338 = pneg %p196
        %s339 = sand.u32 %s186, 1
        %s340 = scalar_lea.sflag [#allocation4], %s339
        %s341 = sand.u32 %s186, 1
        %s342 = smul.addr %s341, 8
        %s343 = scalar_lea.vmem [#allocation10], %s342
        %v344 = vld [vmem:[%s297] sm:$0xf]
        %v345 = vunpack.c.l.bf16 %v344
        %v346 = vld [vmem:[#allocation5] sm:$0xff]
        %v347 = vld [vmem:[#allocation5 + $0x8] sm:$0xff]
        %v348 = vld [vmem:[#allocation5 + $0x10] sm:$0xff]
        %v349 = vld [vmem:[#allocation5 + $0x18] sm:$0xff]
        %v350 = vld [vmem:[#allocation5 + $0x20] sm:$0xff]
        %v351 = vld [vmem:[#allocation5 + $0x28] sm:$0xff]
        %v352 = vld [vmem:[#allocation5 + $0x30] sm:$0xff]
        %v353 = vld [vmem:[#allocation5 + $0x38] sm:$0xff]
        %v354 = vld [vmem:[#allocation5 + $0x40] sm:$0xff]
        %v355 = vld [vmem:[#allocation5 + $0x48] sm:$0xff]
        %v356 = vld [vmem:[#allocation5 + $0x50] sm:$0xff]
        %v357 = vld [vmem:[#allocation5 + $0x58] sm:$0xff]
        %v358 = vld [vmem:[#allocation5 + $0x60] sm:$0xff]
        %v359 = vld [vmem:[#allocation5 + $0x68] sm:$0xff]
        %v360 = vld [vmem:[#allocation5 + $0x70] sm:$0xff]
        %v361 = vld [vmem:[#allocation5 + $0x78] sm:$0xff]
        %v362 = vld [vmem:[#allocation8] sm:$0xf]
        %v363 = vld [vmem:[#allocation8 + $0x4] sm:$0xf]
        %v364 = vld [vmem:[#allocation8 + $0x8] sm:$0xf]
        %v365 = vld [vmem:[#allocation8 + $0xc] sm:$0xf]
        %v366 = vld [vmem:[#allocation8 + $0x10] sm:$0xf]
        %v367 = vld [vmem:[#allocation8 + $0x14] sm:$0xf]
        %v368 = vld [vmem:[#allocation8 + $0x18] sm:$0xf]
        %v369 = vld [vmem:[#allocation8 + $0x1c] sm:$0xf]
        %v370 = vld [vmem:[#allocation8 + $0x20] sm:$0xf]
        %v371 = vld [vmem:[#allocation8 + $0x24] sm:$0xf]
        %v372 = vld [vmem:[#allocation8 + $0x28] sm:$0xf]
        %v373 = vld [vmem:[#allocation8 + $0x2c] sm:$0xf]
        %v374 = vld [vmem:[#allocation8 + $0x30] sm:$0xf]
        %v375 = vld [vmem:[#allocation8 + $0x34] sm:$0xf]
        %v376 = vld [vmem:[#allocation8 + $0x38] sm:$0xf]
        %v377 = vld [vmem:[#allocation8 + $0x3c] sm:$0xf]
        %v378 = vld [vmem:[#allocation8 + $0x40] sm:$0xf]
        %v379 = vld [vmem:[#allocation8 + $0x44] sm:$0xf]
        %v380 = vld [vmem:[#allocation8 + $0x48] sm:$0xf]
        %v381 = vld [vmem:[#allocation8 + $0x4c] sm:$0xf]
        %v382 = vld [vmem:[#allocation8 + $0x50] sm:$0xf]
        %v383 = vld [vmem:[#allocation8 + $0x54] sm:$0xf]
        %v384 = vld [vmem:[#allocation8 + $0x58] sm:$0xf]
        %v385 = vld [vmem:[#allocation8 + $0x5c] sm:$0xf]
        %v386 = vld [vmem:[#allocation8 + $0x60] sm:$0xf]
        %v387 = vld [vmem:[#allocation8 + $0x64] sm:$0xf]
        %v388 = vld [vmem:[#allocation8 + $0x68] sm:$0xf]
        %v389 = vld [vmem:[#allocation8 + $0x6c] sm:$0xf]
        %v390 = vld [vmem:[#allocation8 + $0x70] sm:$0xf]
        %v391 = vld [vmem:[#allocation8 + $0x74] sm:$0xf]
        %v392 = vld [vmem:[#allocation8 + $0x78] sm:$0xf]
        %v393 = vld [vmem:[#allocation8 + $0x7c] sm:$0xf]
        %v394 = vld [vmem:[#allocation7] sm:$0x3]
        %v395 = vld [vmem:[%s4] sm:$0x1]
        %v396 = vld [vmem:[%s5] sm:$0x1]
        %v397 = vld [vmem:[%s6] sm:$0x1]
        %v399 = vperm.slane %v394, 0
        %v400 = vperm.slane %v394, 1
        %v419 = vunpack.c.l.b16 %v346
        %v420 = vunpack.c.h.b16 %v346
        %v421 = vunpack.c.l.b16 %v347
        %v422 = vunpack.c.h.b16 %v347
        %v423 = vunpack.c.l.b16 %v348
        %v424 = vunpack.c.h.b16 %v348
        %v425 = vunpack.c.l.b16 %v349
        %v426 = vunpack.c.h.b16 %v349
        %v427 = vunpack.c.l.b16 %v350
        %v428 = vunpack.c.h.b16 %v350
        %v429 = vunpack.c.l.b16 %v351
        %v430 = vunpack.c.h.b16 %v351
        %v431 = vunpack.c.l.b16 %v352
        %v432 = vunpack.c.h.b16 %v352
        %v433 = vunpack.c.l.b16 %v353
        %v434 = vunpack.c.h.b16 %v353
        %v435 = vunpack.c.l.b16 %v354
        %v436 = vunpack.c.h.b16 %v354
        %v437 = vunpack.c.l.b16 %v355
        %v438 = vunpack.c.h.b16 %v355
        %v439 = vunpack.c.l.b16 %v356
        %v440 = vunpack.c.h.b16 %v356
        %v441 = vunpack.c.l.b16 %v357
        %v442 = vunpack.c.h.b16 %v357
        %v443 = vunpack.c.l.b16 %v358
        %v444 = vunpack.c.h.b16 %v358
        %v445 = vunpack.c.l.b16 %v359
        %v446 = vunpack.c.h.b16 %v359
        %v447 = vunpack.c.l.b16 %v360
        %v448 = vunpack.c.h.b16 %v360
        %v449 = vunpack.c.l.b16 %v361
        %v450 = vunpack.c.h.b16 %v361
        %v451 = vpack.c.b16 %v421, %v419
        %v452 = vpack.c.b16 %v422, %v420
        %v453 = vpack.c.b16 %v425, %v423
        %v454 = vpack.c.b16 %v426, %v424
        %v455 = vpack.c.b16 %v429, %v427
        %v456 = vpack.c.b16 %v430, %v428
        %v457 = vpack.c.b16 %v433, %v431
        %v458 = vpack.c.b16 %v434, %v432
        %v459 = vpack.c.b16 %v437, %v435
        %v460 = vpack.c.b16 %v438, %v436
        %v461 = vpack.c.b16 %v441, %v439
        %v462 = vpack.c.b16 %v442, %v440
        %v463 = vpack.c.b16 %v445, %v443
        %v464 = vpack.c.b16 %v446, %v444
        %v465 = vpack.c.b16 %v449, %v447
        %v466 = vpack.c.b16 %v450, %v448
        %483 = vmatpush.bf16.msra.mxu0 %v465
        %484 = vmatpush.bf16.msra.mxu0 %v463
        %485 = vmatpush.bf16.msra.mxu0 %v461
        %486 = vmatpush.bf16.msra.mxu0 %v459
        %487 = vmatpush.bf16.msra.mxu0 %v457
        %488 = vmatpush.bf16.msra.mxu0 %v455
        %489 = vmatpush.bf16.msra.mxu0 %v453
        %490 = vmatpush.bf16.msra.mxu0 %v451
        %491 = vmatmul.bf16.gmra.mxu0 %v344
        %v492 = vpop.f32.mrf.mxu0
        %v493 = vadd.f32 %v399, %v492
        %v494 = vpop.f32.mrf.mxu0
        %495 = vdwg.mxu0
        %496 = vmatpush.bf16.msra.mxu0 %v466
        %497 = vmatpush.bf16.msra.mxu0 %v464
        %498 = vmatpush.bf16.msra.mxu0 %v462
        %499 = vmatpush.bf16.msra.mxu0 %v460
        %500 = vmatpush.bf16.msra.mxu0 %v458
        %501 = vmatpush.bf16.msra.mxu0 %v456
        %502 = vmatpush.bf16.msra.mxu0 %v454
        %503 = vmatpush.bf16.msra.mxu0 %v452
        %504 = vmatmul.bf16.gmra.mxu0 %v344
        %v505 = vpop.f32.mrf.mxu0
        %v506 = vadd.f32 %v400, %v505
        %v507 = vpop.f32.mrf.mxu0
        %508 = vdwg.mxu0
        %v509 = vmax.f32 %v493, 0.0
        %v510 = vmax.f32 %v506, 0.0
        %v511 = vpack.c.bf16 %v509, %v509
        %v512 = vpack.c.bf16 %v510, %v510
        %v514 = vperm.slane %v395, 0
        %v548 = vunpack.c.l.b16 %v362
        %v549 = vunpack.c.l.b16 %v363
        %v550 = vunpack.c.l.b16 %v364
        %v551 = vunpack.c.l.b16 %v365
        %v552 = vunpack.c.l.b16 %v366
        %v553 = vunpack.c.l.b16 %v367
        %v554 = vunpack.c.l.b16 %v368
        %v555 = vunpack.c.l.b16 %v369
        %v556 = vunpack.c.l.b16 %v370
        %v557 = vunpack.c.l.b16 %v371
        %v558 = vunpack.c.l.b16 %v372
        %v559 = vunpack.c.l.b16 %v373
        %v560 = vunpack.c.l.b16 %v374
        %v561 = vunpack.c.l.b16 %v375
        %v562 = vunpack.c.l.b16 %v376
        %v563 = vunpack.c.l.b16 %v377
        %v564 = vunpack.c.l.b16 %v378
        %v565 = vunpack.c.l.b16 %v379
        %v566 = vunpack.c.l.b16 %v380
        %v567 = vunpack.c.l.b16 %v381
        %v568 = vunpack.c.l.b16 %v382
        %v569 = vunpack.c.l.b16 %v383
        %v570 = vunpack.c.l.b16 %v384
        %v571 = vunpack.c.l.b16 %v385
        %v572 = vunpack.c.l.b16 %v386
        %v573 = vunpack.c.l.b16 %v387
        %v574 = vunpack.c.l.b16 %v388
        %v575 = vunpack.c.l.b16 %v389
        %v576 = vunpack.c.l.b16 %v390
        %v577 = vunpack.c.l.b16 %v391
        %v578 = vunpack.c.l.b16 %v392
        %v579 = vunpack.c.l.b16 %v393
        %v580 = vpack.c.b16 %v549, %v548
        %v581 = vpack.c.b16 %v551, %v550
        %v582 = vpack.c.b16 %v553, %v552
        %v583 = vpack.c.b16 %v555, %v554
        %v584 = vpack.c.b16 %v557, %v556
        %v585 = vpack.c.b16 %v559, %v558
        %v586 = vpack.c.b16 %v561, %v560
        %v587 = vpack.c.b16 %v563, %v562
        %v588 = vpack.c.b16 %v565, %v564
        %v589 = vpack.c.b16 %v567, %v566
        %v590 = vpack.c.b16 %v569, %v568
        %v591 = vpack.c.b16 %v571, %v570
        %v592 = vpack.c.b16 %v573, %v572
        %v593 = vpack.c.b16 %v575, %v574
        %v594 = vpack.c.b16 %v577, %v576
        %v595 = vpack.c.b16 %v579, %v578
        %612 = vmatpush.bf16.msra.mxu0 %v587
        %613 = vmatpush.bf16.msra.mxu0 %v586
        %614 = vmatpush.bf16.msra.mxu0 %v585
        %615 = vmatpush.bf16.msra.mxu0 %v584
        %616 = vmatpush.bf16.msra.mxu0 %v583
        %617 = vmatpush.bf16.msra.mxu0 %v582
        %618 = vmatpush.bf16.msra.mxu0 %v581
        %619 = vmatpush.bf16.msra.mxu0 %v580
        %620 = vmatmul.bf16.gmra.mxu0 %v511
        %v621 = vpop.f32.mrf.mxu0
        %v622 = vadd.f32 %v514, %v621
        %v623 = vpop.f32.mrf.mxu0
        %624 = vdwg.mxu0
        %625 = vmatpush.bf16.msra.mxu0 %v595
        %626 = vmatpush.bf16.msra.mxu0 %v594
        %627 = vmatpush.bf16.msra.mxu0 %v593
        %628 = vmatpush.bf16.msra.mxu0 %v592
        %629 = vmatpush.bf16.msra.mxu0 %v591
        %630 = vmatpush.bf16.msra.mxu0 %v590
        %631 = vmatpush.bf16.msra.mxu0 %v589
        %632 = vmatpush.bf16.msra.mxu0 %v588
        %633 = vmatmul.bf16.gmra.mxu0 %v512
        %v634 = vpop.f32.mrf.mxu0
        %v635 = vadd.f32 %v622, %v634
        %v636 = vpop.f32.mrf.mxu0
        %637 = vdwg.mxu0
        %v638 = vadd.f32 %v635, %v345
        %639 = vadd.xlane.f32.xlu0 %v638
        %v640 = vpop.xlane.xlu0 %639
        %v641 = vrcp.pop 128.0
        %v642 = vmul.f32 128.0, %v641
        %v643 = vsub.f32 1.0, %v642
        %v644 = vmul.f32 %v641, %v643
        %v645 = vadd.f32 %v641, %v644
        %vm646 = vweird.f32 %v641
        %v647 = vsel %vm646, %v641, %v645
        %v648 = vmul.f32 %v640, %v647
        %v649 = vsub.f32 %v638, %v648
        %v650 = vmul.f32 %v649, %v649
        %651 = vadd.xlane.f32.xlu0 %v650
        %v652 = vpop.xlane.xlu0 %651
        %v653 = vmul.f32 %v652, 0.007874016
        %v654 = vrsqrt.pop %v653
        %v655 = vmul.f32 %v654, %v653
        %v656 = vmul.f32 %v655, %v654
        %v657 = vmul.f32 0.5, %v656
        %v658 = vsub.f32 1.5, %v657
        %v659 = vmul.f32 %v654, %v658
        %v660 = vmul.f32 %v653, %v659
        %vm661 = vcmp.eq.f32.partialorder %v653, inf
        %v662 = vsel %vm661, %v653, %v660
        %vm663 = vcmp.eq.f32.partialorder %v653, 0.0
        %v664 = vand.u32 %v653, 2147483648
        %v665 = vsel %vm663, %v664, %v662
        %v666 = vadd.f32 %v665, 0.001
        %v667 = vrcp.pop %v666
        %v668 = vmul.f32 %v666, %v667
        %v669 = vsub.f32 1.0, %v668
        %v670 = vmul.f32 %v667, %v669
        %v671 = vadd.f32 %v667, %v670
        %vm672 = vweird.f32 %v666
        %vm673 = vweird.f32 %v667
        %vm674 = vmor %vm672, %vm673
        %v675 = vsel %vm674, %v667, %v671
        %v676 = vand.u32 2147483647, %v666
        %vm677 = vcmp.eq.f32.partialorder %v676, 8.507059e+37
        %v678 = vand.u32 %v666, 2147483648
        %v679 = vor.u32 1.1754944e-38, %v678
        %v680 = vsel %vm677, %v679, %v675
        %v681 = vmul.f32 %v649, %v680
        %v683 = vperm.slane %v396, 0
        %v685 = vmul.f32 %v681, %v683
        %v687 = vperm.slane %v397, 0
        %v689 = vadd.f32 %v685, %v687
        %690 = vst [vmem:[%s343] sm:$0xff] %v689
        %s691 = sand.u32 %s186, 1
        %s692 = scalar_lea.sflag [#allocation4], %s691
        %s693 = sand.u32 %s186, 1
        %s694 = smul.addr %s693, 8
        %s695 = scalar_lea.vmem [#allocation10], %s694
        // Predicated region
        $region65: #{tpu_custom_call.1} parent=47 // pred_check
          %p696 = pneg %p196
        $region66: #{tpu_custom_call.1} parent=47 // pred_check_branch
          %698 = sbr.rel (%p696) target = $region68
        $region67: #{tpu_custom_call.1} parent=47 // pred_region
          %700 = vsyncadd %s692, 0
          %s701 = smul.addr %s26, 8
          %s702 = scalar_lea.hbm %s7, %s701
          %s704 = sshll.u32 %s695, 4
          %s705 = int_to_ptr.vmem [resolvable:$true] %s704
          %s706 = sshll.u32 %s702, 4
          %s707 = int_to_ptr.hbm [resolvable:$true] %s706
          %709 = dma.vmem_to_hbm [thread:$0]  %s705, 128, %s707, %s692
        $region68: #{tpu_custom_call.1} parent=47 // pred_fallthru
          _
      $region48: #{tpu_custom_call.1} parent=5 // pred_fallthru
        _
      %p710 = scmp.le.s32.totalorder 2, %s21
      // Predicated region
      $region69: #{tpu_custom_call.1} parent=5 // pred_check
        %p711 = pneg %p710
      $region70: #{tpu_custom_call.1} parent=5 // pred_check_branch
        %713 = sbr.rel (%p711) target = $region72
      $region71: #{tpu_custom_call.1} parent=5 // pred_region
        %s714 = ssub.s32 %s21, 2
        // Predicated region
        $region73: #{tpu_custom_call.1} parent=71 // pred_check
          %p715 = pneg %p202
        $region74: #{tpu_custom_call.1} parent=71 // pred_check_branch
          %717 = sbr.rel (%p715) target = $region76
        $region75: #{tpu_custom_call.1} parent=71 // pred_region
          %s718 = sand.u32 %s187, 1
          %s719 = scalar_lea.sflag [#allocation4], %s718
          %s720 = sand.u32 %s187, 1
          %s721 = smul.addr %s720, 8
          %s722 = scalar_lea.vmem [#allocation10], %s721
          %724 = dma.done %s719, 128
        $region76: #{tpu_custom_call.1} parent=71 // pred_fallthru
          _
      $region72: #{tpu_custom_call.1} parent=5 // pred_fallthru
        _
    $region6: #{tpu_custom_call.1} parent=1 // loop_footer
      %s25 = sadd.s32 1, %s21
    $region7: #{tpu_custom_call.1} parent=1 // loop_footer_branch
      %20 = sbr.rel target = $region3
    $region8: #{tpu_custom_call.1} parent=1 // loop_exit
      _
    %725 = vsyncpa [#allocation3], 1
    %s726 = scalar_lea.sflag [#allocation3], 1
    %727 = vsyncpa %s726, 1
    %728 = vsyncpa [#allocation6], 1
    %729 = vsyncpa [#allocation9], 1
    %730 = vsyncpa [#allocation4], 1
    %s731 = scalar_lea.sflag [#allocation4], 1
    %732 = vsyncpa %s731, 1

</llo_original>
